<compile_context>
chip_gen: v5e
topology: v5e:2x2
jax: 0.10.0
libtpu: 0.0.40
codegen_flags: <defaults>
</compile_context>

<pallas_src>
import functools
import math

import jax
import jax.numpy as jnp
from jax.experimental import pallas as pl
from jax.experimental.pallas import tpu as pltpu


def _round_up(x, m):
    return (x + m - 1) // m * m


def _pad_kc(kc):
    """Pad the contraction dim: full 128 alignment when cheap, else bf16 sublane pack (16)."""
    kc128 = _round_up(kc, 128)
    if kc128 - kc <= max(kc // 8, 16):      # <= ~12.5% zero-pad overhead -> full alignment
        return kc128
    return _round_up(kc, 16)


def _vmem_capacity_bytes():
    """Physical VMEM per TensorCore (128 MiB v5e/v6e, 64 MiB v7x); conservative fallback."""
    try:
        info = pltpu.get_tpu_info()
        cap = getattr(info, "vmem_capacity_bytes", None)
        if cap:
            return int(cap)
    except Exception:
        pass
    return 64 * 1024 * 1024


def _largest_tile_dividing(hw_pad, cap):
    """Largest multiple of 128 that divides hw_pad and is <= cap (hw_pad is a multiple of 128)."""
    cap = max(128, min(cap, hw_pad))
    for t in range(cap // 128 * 128, 127, -128):
        if hw_pad % t == 0:
            return t
    return 128


def _select_tile(hw_pad, *, n, c2_blocks, kc_pad, c2_tile, out_bytes, vmem_limit, max_tile):
    """Budget-driven lane-dense spatial tile + enough grid blocks for 2 TCs / megacore."""
    # Bytes per lane of spatial tile: patches (2 bufs, bf16) + output (2 bufs, out_bytes).
    per_lane = 2 * kc_pad * 2 + 2 * c2_tile * out_bytes
    # Fixed cost: weights (worst case 2 bufs, bf16) + lane-padded scale/bias (f32).
    fixed = 2 * (c2_tile * kc_pad * 2) + 4 * c2_tile * 128 * 4
    budget = int(vmem_limit * 0.85) - fixed
    cap = max(128, min(max_tile, budget // per_lane if per_lane > 0 else max_tile))
    tile = _largest_tile_dividing(hw_pad, cap)
    # Prefer >= 4 independent output blocks, require >= 2 where possible (v7x has 2 TCs).
    while n * c2_blocks * (hw_pad // tile) < 4 and tile > 512:
        tile = _largest_tile_dividing(hw_pad, tile // 2)
    while n * c2_blocks * (hw_pad // tile) < 2 and tile > 128:
        tile = _largest_tile_dividing(hw_pad, tile // 2)
    return tile


def _gemm_bn_act_kernel(p_ref, w_ref, s_ref, b_ref, o_ref, *, act):
    """One (batch, c2-block, spatial-tile) grid step: conv-as-GEMM + BN (eval) + activation.

    p_ref: (KC_pad, T)     bf16  im2col patches, lane-dense spatial tile T (multiple of 128)
    w_ref: (C2_tile, KC_pad) bf16 conv weights
    s_ref: (C2_tile, 1)    f32   BN scale  (gamma / sqrt(var + eps))
    b_ref: (C2_tile, 1)    f32   BN bias   (beta - mean * scale)
    o_ref: (C2_tile, T)    bf16  output tile (NCHW layout, spatial flattened -> lane-dense)
    """
    acc = jnp.dot(w_ref[...], p_ref[...], preferred_element_type=jnp.float32)  # single MXU pass
    y = acc * s_ref[...] + b_ref[...]          # BN applied in f32 on the accumulator
    if act == "silu":
        y = y * jax.nn.sigmoid(y)              # exp goes to the EUP slot
    elif act == "relu":
        y = jnp.maximum(y, 0.0)
    elif act == "relu6":
        y = jnp.clip(y, 0.0, 6.0)
    elif act != "none":
        raise ValueError(f"unsupported act: {act}")
    o_ref[...] = y.astype(o_ref.dtype)         # unmasked, lane-dense store


def conv_norm_act(x, weight, gamma, beta, running_mean, running_var, *,
                  stride=1, dilation=1, groups=1, eps=1e-6, act="silu",
                  skip=False, out_dtype=jnp.bfloat16, max_spatial_tile=8192):
    """ConvNormAct.forward(x) in eval mode.

    x:      (N, C1, H, W)      float32, PyTorch NCHW
    weight: (C2, C1, KH, KW)   PyTorch OIHW conv weight (bias=False)
    returns (N, C2, Hout, Wout) in out_dtype (bf16 by default; accumulation is f32)
    """
    N, C1, H, W = x.shape
    C2, C1g, KH, KW = weight.shape
    assert groups == 1, "groups > 1 not implemented"
    assert C1g == C1

    # padding = ceil((k - s) / 2), exactly as in the module (dilation-agnostic on purpose)
    ph = math.ceil((KH - stride) / 2)
    pw = math.ceil((KW - stride) / 2)
    Hout = (H + 2 * ph - dilation * (KH - 1) - 1) // stride + 1
    Wout = (W + 2 * pw - dilation * (KW - 1) - 1) // stride + 1
    HW = Hout * Wout
    KC = KH * KW * C1
    KC_pad = _pad_kc(KC)

    x_orig = x
    # --- glue (plain JAX): bf16 BEFORE im2col so the materialized patch tensor is half-size ---
    xb = x.astype(jnp.bfloat16)
    x_pad = jnp.pad(xb, ((0, 0), (0, 0), (ph, ph), (pw, pw)))
    cols = []
    for kh in range(KH):
        for kw in range(KW):
            h0, w0 = kh * dilation, kw * dilation
            cols.append(x_pad[:, :,
                              h0:h0 + (Hout - 1) * stride + 1:stride,
                              w0:w0 + (Wout - 1) * stride + 1:stride])
    # (N, KH*KW, C1, Hout, Wout) -> (N, KC, HW); contraction index = (kh*KW + kw)*C1 + c1
    p = jnp.stack(cols, axis=1).reshape(N, KC, HW)

    hw_pad = _round_up(HW, 128)
    if KC_pad != KC or hw_pad != HW:
        p = jnp.pad(p, ((0, 0), (0, KC_pad - KC), (0, hw_pad - HW)))

    # Weights in the matching (kh, kw, c1) order; BN stays as f32 scale/bias in the kernel.
    w_mat = jnp.transpose(weight, (0, 2, 3, 1)).reshape(C2, KC).astype(jnp.bfloat16)
    if KC_pad != KC:
        w_mat = jnp.pad(w_mat, ((0, 0), (0, KC_pad - KC)))
    scale = (gamma / jnp.sqrt(running_var + eps)).astype(jnp.float32).reshape(C2, 1)
    bias = (beta - running_mean * (gamma / jnp.sqrt(running_var + eps))
            ).astype(jnp.float32).reshape(C2, 1)

    # Optional C2 grid axis keeps the f32 (C2, T) accumulator bounded for large channel counts.
    c2_tile = 256 if (C2 > 256 and C2 % 256 == 0) else C2
    c2_blocks = C2 // c2_tile

    vmem_cap = _vmem_capacity_bytes()
    vmem_limit = int(min(100 * 1024 * 1024, (vmem_cap * 3) // 4))  # ~96 MiB v5e/v6e, ~48 MiB v7x
    out_bytes = jnp.dtype(out_dtype).itemsize
    tile = _select_tile(hw_pad, n=N, c2_blocks=c2_blocks, kc_pad=KC_pad, c2_tile=c2_tile,
                        out_bytes=out_bytes, vmem_limit=vmem_limit, max_tile=max_spatial_tile)
    grid = (N, c2_blocks, hw_pad // tile)

    kernel = functools.partial(_gemm_bn_act_kernel, act=act)
    out_shape = jax.ShapeDtypeStruct((N, C2, hw_pad), out_dtype)
    out_spec = pl.BlockSpec((pl.Squeezed(), c2_tile, tile), lambda n, c, t: (n, c, t))
    cparams = pltpu.CompilerParams(
        dimension_semantics=("parallel", "parallel", "parallel"),  # all output blocks independent
        vmem_limit_bytes=vmem_limit,
    )

    def _in_specs(single_buffer_consts):
        const_kw = {"pipeline_mode": pl.Buffered(1)} if single_buffer_consts else {}
        const_idx = lambda n, c, t: (c, 0)
        return [
            pl.BlockSpec((pl.Squeezed(), KC_pad, tile), lambda n, c, t: (n, 0, t)),  # patches
            pl.BlockSpec((c2_tile, KC_pad), const_idx, **const_kw),                  # weights
            pl.BlockSpec((c2_tile, 1), const_idx, **const_kw),                       # BN scale
            pl.BlockSpec((c2_tile, 1), const_idx, **const_kw),                       # BN bias
        ]

    def _call(single_buffer_consts):
        return pl.pallas_call(
            kernel,
            out_shape=out_shape,
            grid_spec=pltpu.PrefetchScalarGridSpec(
                num_scalar_prefetch=0,
                grid=grid,
                in_specs=_in_specs(single_buffer_consts),
                out_specs=out_spec,
            ),
            compiler_params=cparams,
        )(p, w_mat, scale, bias)

    try:
        # Single-buffer the constant weight/scale/bias blocks only when their index never changes.
        out_flat = _call(c2_blocks == 1)
    except Exception:
        # Fallback if this jax version rejects pl.Buffered(1): default double buffering.
        out_flat = _call(False)

    if hw_pad != HW:
        # TODO(synk): consumers could read the padded (N, C2, hw_pad) layout to skip this copy.
        out_flat = out_flat[:, :, :HW]
    out = out_flat.reshape(N, C2, Hout, Wout)

    if skip and C1 == C2 and (Hout, Wout) == (H, W):
        out = out + x_orig.astype(out.dtype)   # DropPath(rate=0) == identity
    return out


def _activation_ref(y, act):
    if act == "silu":
        return y * jax.nn.sigmoid(y)
    if act == "relu":
        return jnp.maximum(y, 0.0)
    if act == "relu6":
        return jnp.clip(y, 0.0, 6.0)
    return y


def _reference(x, weight, gamma, beta, running_mean, running_var, *,
               stride=1, dilation=1, eps=1e-6, act="silu", skip=False):
    """Pure-JAX f32 reference (lax conv + BN eval + act) for a sanity check."""
    KH, KW = weight.shape[2], weight.shape[3]
    ph = math.ceil((KH - stride) / 2)
    pw = math.ceil((KW - stride) / 2)
    y = jax.lax.conv_general_dilated(
        x, weight, window_strides=(stride, stride),
        padding=((ph, ph), (pw, pw)),
        rhs_dilation=(dilation, dilation),
        dimension_numbers=("NCHW", "OIHW", "NCHW"))
    scale = (gamma / jnp.sqrt(running_var + eps)).reshape(1, -1, 1, 1)
    bias = (beta - running_mean * gamma / jnp.sqrt(running_var + eps)).reshape(1, -1, 1, 1)
    y = _activation_ref(y * scale + bias, act)
    if skip and x.shape == y.shape:
        y = y + x
    return y


if __name__ == "__main__":
    # ConvNormAct(dim_in=4, dim_out=8, kernel_size=3, stride=1, norm='bn_2d', act='silu')
    N, C1, H, W = 2, 4, 16, 16
    C2, K = 8, 3

    key = jax.random.PRNGKey(0)
    kx, kw, kg, kb, km, kv = jax.random.split(key, 6)

    x = jax.random.normal(kx, (N, C1, H, W), dtype=jnp.float32)
    weight = jax.random.normal(kw, (C2, C1, K, K), dtype=jnp.float32) * 0.1
    gamma = 1.0 + 0.1 * jax.random.normal(kg, (C2,), dtype=jnp.float32)
    beta = 0.1 * jax.random.normal(kb, (C2,), dtype=jnp.float32)
    running_mean = 0.05 * jax.random.normal(km, (C2,), dtype=jnp.float32)
    running_var = 1.0 + 0.1 * jax.random.uniform(kv, (C2,), dtype=jnp.float32)

    out = conv_norm_act(x, weight, gamma, beta, running_mean, running_var,
                        stride=1, dilation=1, eps=1e-6, act="silu")
    out = jax.block_until_ready(out)

    ref = _reference(x, weight, gamma, beta, running_mean, running_var,
                     stride=1, dilation=1, eps=1e-6, act="silu")
    assert out.shape == (N, C2, H, W)
    out_f32 = out.astype(jnp.float32)
    max_err = float(jnp.max(jnp.abs(out_f32 - ref)))
    # bf16 inputs + bf16 output storage / f32 accumulation -> loose tolerance vs pure-f32 ref.
    assert jnp.allclose(out_f32, ref, rtol=3e-2, atol=3e-2), \
        f"mismatch vs reference (max abs err {max_err})"

    print("KERNEL_OK")
</pallas_src>

<mosaic_0001>
module attributes {stable_mosaic.version = 11 : i64} {
  func.func @_gemm_bn_act_kernel(%arg0: i32, %arg1: i32, %arg2: i32, %arg3: memref<1x48x256xbf16, #tpu.memory_space<vmem>>, %arg4: memref<8x48xbf16, #tpu.memory_space<vmem>>, %arg5: memref<8x1xf32, #tpu.memory_space<vmem>>, %arg6: memref<8x1xf32, #tpu.memory_space<vmem>>, %arg7: memref<1x8x256xbf16, #tpu.memory_space<vmem>>) attributes {dimension_semantics = [#tpu.dimension_semantics<parallel>, #tpu.dimension_semantics<parallel>, #tpu.dimension_semantics<parallel>], iteration_bounds = array<i64: 2, 1, 1>, scalar_prefetch = 0 : i64, scratch_operands = 0 : i64, tpu.core_type = #tpu.core_type<tc>, window_params = [{transform_indices = @transform_0, window_bounds = array<i64: 1, 48, 256>}, {pipeline_mode = #tpu.pipeline_mode<synchronous>, transform_indices = @transform_1, window_bounds = array<i64: 8, 48>}, {pipeline_mode = #tpu.pipeline_mode<synchronous>, transform_indices = @transform_2, window_bounds = array<i64: 8, 1>}, {pipeline_mode = #tpu.pipeline_mode<synchronous>, transform_indices = @transform_3, window_bounds = array<i64: 8, 1>}, {transform_indices = @transform_4, window_bounds = array<i64: 1, 8, 256>}]} {
    %c0 = arith.constant 0 : index
    %c0_0 = arith.constant 0 : index
    %0 = vector.load %arg4[%c0, %c0_0] : memref<8x48xbf16, #tpu.memory_space<vmem>>, vector<8x48xbf16>
    %c0_1 = arith.constant 0 : index
    %c0_2 = arith.constant 0 : index
    %c0_3 = arith.constant 0 : index
    %1 = vector.load %arg3[%c0_1, %c0_2, %c0_3] : memref<1x48x256xbf16, #tpu.memory_space<vmem>>, vector<1x48x256xbf16>
    %2 = vector.shape_cast %1 : vector<1x48x256xbf16> to vector<48x256xbf16>
    %cst = arith.constant dense<0.000000e+00> : vector<8x256xf32>
    %3 = tpu.matmul %0, %2, %cst {dimension_numbers = #tpu.dot_dimension_numbers<[1], [0], [0], [1], [0, 0, 1, 1], [], []>} : vector<8x48xbf16>, vector<48x256xbf16>, vector<8x256xf32> -> vector<8x256xf32>
    %c0_4 = arith.constant 0 : index
    %c0_5 = arith.constant 0 : index
    %4 = vector.load %arg5[%c0_4, %c0_5] : memref<8x1xf32, #tpu.memory_space<vmem>>, vector<8x1xf32>
    %5 = vector.broadcast %4 : vector<8x1xf32> to vector<8x256xf32>
    %6 = arith.mulf %3, %5 : vector<8x256xf32>
    %c0_6 = arith.constant 0 : index
    %c0_7 = arith.constant 0 : index
    %7 = vector.load %arg6[%c0_6, %c0_7] : memref<8x1xf32, #tpu.memory_space<vmem>>, vector<8x1xf32>
    %8 = vector.broadcast %7 : vector<8x1xf32> to vector<8x256xf32>
    %9 = arith.addf %6, %8 : vector<8x256xf32>
    %10 = arith.negf %9 : vector<8x256xf32>
    %11 = math.exp %10 : vector<8x256xf32>
    %cst_8 = arith.constant 1.000000e+00 : f32
    %12 = vector.broadcast %cst_8 : f32 to vector<8x256xf32>
    %13 = arith.addf %12, %11 : vector<8x256xf32>
    %14 = arith.divf %12, %13 : vector<8x256xf32>
    %15 = arith.mulf %9, %14 : vector<8x256xf32>
    %16 = arith.truncf %15 : vector<8x256xf32> to vector<8x256xbf16>
    %c0_9 = arith.constant 0 : index
    %c0_10 = arith.constant 0 : index
    %c0_11 = arith.constant 0 : index
    %17 = vector.load %arg7[%c0_9, %c0_10, %c0_11] : memref<1x8x256xbf16, #tpu.memory_space<vmem>>, vector<1x8x256xbf16>
    %18 = vector.shape_cast %17 : vector<1x8x256xbf16> to vector<8x256xbf16>
    %19 = vector.shape_cast %16 : vector<8x256xbf16> to vector<1x8x256xbf16>
    tpu.vector_store %arg7[%c0_9, %c0_10, %c0_11], %19 {strides = array<i32>} : memref<1x8x256xbf16, #tpu.memory_space<vmem>>, vector<1x8x256xbf16>,
    return
  }
  func.func @transform_0(%arg0: i32, %arg1: i32, %arg2: i32) -> (i32, i32, i32) {
    %c0_i32 = arith.constant 0 : i32
    %c0_i32_0 = arith.constant 0 : i32
    return %arg0, %c0_i32, %arg2 : i32, i32, i32
  }
  func.func @transform_1(%arg0: i32, %arg1: i32, %arg2: i32) -> (i32, i32) {
    %c0_i32 = arith.constant 0 : i32
    %c0_i32_0 = arith.constant 0 : i32
    return %arg1, %c0_i32 : i32, i32
  }
  func.func @transform_2(%arg0: i32, %arg1: i32, %arg2: i32) -> (i32, i32) {
    %c0_i32 = arith.constant 0 : i32
    %c0_i32_0 = arith.constant 0 : i32
    return %arg1, %c0_i32 : i32, i32
  }
  func.func @transform_3(%arg0: i32, %arg1: i32, %arg2: i32) -> (i32, i32) {
    %c0_i32 = arith.constant 0 : i32
    %c0_i32_0 = arith.constant 0 : i32
    return %arg1, %c0_i32 : i32, i32
  }
  func.func @transform_4(%arg0: i32, %arg1: i32, %arg2: i32) -> (i32, i32, i32) {
    %c0_i32 = arith.constant 0 : i32
    return %arg0, %arg1, %arg2 : i32, i32, i32
  }
}

module attributes {stable_mosaic.version = 11 : i64} {
  func.func @_gemm_bn_act_kernel(%arg0: i32, %arg1: i32, %arg2: i32, %arg3: memref<1x48x256xbf16, #tpu.memory_space<vmem>>, %arg4: memref<8x48xbf16, #tpu.memory_space<vmem>>, %arg5: memref<8x1xf32, #tpu.memory_space<vmem>>, %arg6: memref<8x1xf32, #tpu.memory_space<vmem>>, %arg7: memref<1x8x256xbf16, #tpu.memory_space<vmem>>) attributes {dimension_semantics = [#tpu.dimension_semantics<parallel>, #tpu.dimension_semantics<parallel>, #tpu.dimension_semantics<parallel>], iteration_bounds = array<i64: 2, 1, 1>, scalar_prefetch = 0 : i64, scratch_operands = 0 : i64, tpu.core_type = #tpu.core_type<tc>, window_params = [{transform_indices = @transform_0, window_bounds = array<i64: 1, 48, 256>}, {transform_indices = @transform_1, window_bounds = array<i64: 8, 48>}, {transform_indices = @transform_2, window_bounds = array<i64: 8, 1>}, {transform_indices = @transform_3, window_bounds = array<i64: 8, 1>}, {transform_indices = @transform_4, window_bounds = array<i64: 1, 8, 256>}]} {
    %c0 = arith.constant 0 : index
    %c0_0 = arith.constant 0 : index
    %0 = vector.load %arg4[%c0, %c0_0] : memref<8x48xbf16, #tpu.memory_space<vmem>>, vector<8x48xbf16>
    %c0_1 = arith.constant 0 : index
    %c0_2 = arith.constant 0 : index
    %c0_3 = arith.constant 0 : index
    %1 = vector.load %arg3[%c0_1, %c0_2, %c0_3] : memref<1x48x256xbf16, #tpu.memory_space<vmem>>, vector<1x48x256xbf16>
    %2 = vector.shape_cast %1 : vector<1x48x256xbf16> to vector<48x256xbf16>
    %cst = arith.constant dense<0.000000e+00> : vector<8x256xf32>
    %3 = tpu.matmul %0, %2, %cst {dimension_numbers = #tpu.dot_dimension_numbers<[1], [0], [0], [1], [0, 0, 1, 1], [], []>} : vector<8x48xbf16>, vector<48x256xbf16>, vector<8x256xf32> -> vector<8x256xf32>
    %c0_4 = arith.constant 0 : index
    %c0_5 = arith.constant 0 : index
    %4 = vector.load %arg5[%c0_4, %c0_5] : memref<8x1xf32, #tpu.memory_space<vmem>>, vector<8x1xf32>
    %5 = vector.broadcast %4 : vector<8x1xf32> to vector<8x256xf32>
    %6 = arith.mulf %3, %5 : vector<8x256xf32>
    %c0_6 = arith.constant 0 : index
    %c0_7 = arith.constant 0 : index
    %7 = vector.load %arg6[%c0_6, %c0_7] : memref<8x1xf32, #tpu.memory_space<vmem>>, vector<8x1xf32>
    %8 = vector.broadcast %7 : vector<8x1xf32> to vector<8x256xf32>
    %9 = arith.addf %6, %8 : vector<8x256xf32>
    %10 = arith.negf %9 : vector<8x256xf32>
    %11 = math.exp %10 : vector<8x256xf32>
    %cst_8 = arith.constant 1.000000e+00 : f32
    %12 = vector.broadcast %cst_8 : f32 to vector<8x256xf32>
    %13 = arith.addf %12, %11 : vector<8x256xf32>
    %14 = arith.divf %12, %13 : vector<8x256xf32>
    %15 = arith.mulf %9, %14 : vector<8x256xf32>
    %16 = arith.truncf %15 : vector<8x256xf32> to vector<8x256xbf16>
    %c0_9 = arith.constant 0 : index
    %c0_10 = arith.constant 0 : index
    %c0_11 = arith.constant 0 : index
    %17 = vector.load %arg7[%c0_9, %c0_10, %c0_11] : memref<1x8x256xbf16, #tpu.memory_space<vmem>>, vector<1x8x256xbf16>
    %18 = vector.shape_cast %17 : vector<1x8x256xbf16> to vector<8x256xbf16>
    %19 = vector.shape_cast %16 : vector<8x256xbf16> to vector<1x8x256xbf16>
    tpu.vector_store %arg7[%c0_9, %c0_10, %c0_11], %19 {strides = array<i32>} : memref<1x8x256xbf16, #tpu.memory_space<vmem>>, vector<1x8x256xbf16>,
    return
  }
  func.func @transform_0(%arg0: i32, %arg1: i32, %arg2: i32) -> (i32, i32, i32) {
    %c0_i32 = arith.constant 0 : i32
    %c0_i32_0 = arith.constant 0 : i32
    return %arg0, %c0_i32, %arg2 : i32, i32, i32
  }
  func.func @transform_1(%arg0: i32, %arg1: i32, %arg2: i32) -> (i32, i32) {
    %c0_i32 = arith.constant 0 : i32
    %c0_i32_0 = arith.constant 0 : i32
    return %arg1, %c0_i32 : i32, i32
  }
  func.func @transform_2(%arg0: i32, %arg1: i32, %arg2: i32) -> (i32, i32) {
    %c0_i32 = arith.constant 0 : i32
    %c0_i32_0 = arith.constant 0 : i32
    return %arg1, %c0_i32 : i32, i32
  }
  func.func @transform_3(%arg0: i32, %arg1: i32, %arg2: i32) -> (i32, i32) {
    %c0_i32 = arith.constant 0 : i32
    %c0_i32_0 = arith.constant 0 : i32
    return %arg1, %c0_i32 : i32, i32
  }
  func.func @transform_4(%arg0: i32, %arg1: i32, %arg2: i32) -> (i32, i32, i32) {
    %c0_i32 = arith.constant 0 : i32
    return %arg0, %arg1, %arg2 : i32, i32, i32
  }
}

</mosaic_0001>

<llo_original>
// kernel: tpu_custom_call.1
$region0: #{tpu_custom_call.1}
  #allocation0 [shape = 'u32[]', space=smem, size = 0x4, offset = 0x4, fixed_abs, tag = 'smem constant byte address 0x4 - core index']
  #allocation1 [shape = 'u32[72,128]{1,0:T(1,128)}', space=vmem, size = 0x9000, scoped, tag = 'internal scratch']
  %s0 = inlined_call_operand.hbm [shape: bf16[2,48,256], index: 0, kind: input, shape index: {}]
  %s1 = inlined_call_operand.vmem [shape: bf16[8,48], index: 1, kind: input, shape index: {}]
  %s2 = inlined_call_operand.vmem [shape: f32[8,1], index: 2, kind: input, shape index: {}]
  %s3 = inlined_call_operand.vmem [shape: f32[8,1], index: 3, kind: input, shape index: {}]
  %s4 = inlined_call_operand.hbm [shape: bf16[2,8,256], index: 4, kind: output, shape index: {}]
  %s5 = sld [smem:[#allocation0]]
  $region53: #{tpu_custom_call.1} parent=0
    _
  %s7 = ssub.s32 1, %s5
  %s8 = scalar_select 0, %s7, %s5
  $region1: #{tpu_custom_call.1} parent=0
    #allocation2 [shape = 'u8[49152]{0}', space=vmem, size = 0xc000, scoped, tag = 'input window, operand 0']
    #allocation3 [shape = 's32[2]{0}', space=sflag, size = 0x8, scoped, tag = 'scoped memory for tpu_custom_call.1']
    #allocation4 [shape = 's32[2]{0}', space=sflag, size = 0x8, scoped, tag = 'scoped memory for tpu_custom_call.1']
    #allocation5 [shape = 'u8[8192]{0}', space=vmem, size = 0x2000, scoped, tag = 'output window, operand 0']
    %9 = vsyncpa [#allocation3], 0
    %s10 = scalar_lea.sflag [#allocation3], 1
    %11 = vsyncpa %s10, 0
    %12 = vsyncpa [#allocation4], 0
    %s13 = scalar_lea.sflag [#allocation4], 1
    %14 = vsyncpa %s13, 0
    loop: start=0, step=1, limit=4
    $region2: #{tpu_custom_call.1} parent=1 // loop_pre_header
      _
    $region3: #{tpu_custom_call.1} parent=1 // loop_header
      %s16 = sphi 0, %s20
      %p17 = scmp.ge.s32.totalorder %s16, 4
      %s23 = sphi 0, %s42
      %s24 = sphi 0, %s38
      %s25 = sphi 0, %s34
      %s26 = sphi 0, %s23
      %s27 = sphi 0, %s24
      %s28 = sphi 0, %s25
      %s29 = sphi 0, %s26
      %s30 = sphi 0, %s27
      %s31 = sphi 0, %s28
      %s47 = sphi 0, %s49
      %s50 = sphi 0, %s47
      %s51 = sphi 0, %s50
      %s67 = sphi 0, %s51
      %s73 = sphi 0, %s75
      %s76 = sphi 0, %s73
      %s77 = sphi 0, %s76
      %s93 = sphi 0, %s77
      %s99 = sphi 0, %s101
      %s102 = sphi 0, %s99
      %s103 = sphi 0, %s102
      %s119 = sphi 0, %s103
      %s125 = sphi 0, %s127
      %s128 = sphi 0, %s125
      %s129 = sphi 0, %s128
      %s145 = sphi 0, %s129
      %s155 = sphi 0, %s157
      %s158 = sphi 0, %s155
      %s159 = sphi 0, %s158
      %s175 = sphi 0, %s159
    $region4: #{tpu_custom_call.1} parent=1 // loop_header_branch
      %19 = sbr.rel (%p17) target = $region8
    $region5: #{tpu_custom_call.1} parent=1 // loop_body
      %s21 = ssub.s32 %s16, 1
      %s22 = ssub.s32 %s16, 2
      %s32 = sadd.s32 1, %s25
      %p33 = scmp.ge.s32.totalorder %s32, 1
      %s34 = scalar_select %p33, 0, %s32
      %s35 = sadd.s32 1, %s24
      %s36 = scalar_select %p33, %s35, %s24
      %p37 = scmp.ge.s32.totalorder %s36, 1
      %s38 = scalar_select %p37, 0, %s36
      %s39 = sadd.s32 1, %s23
      %s40 = scalar_select %p37, %s39, %s23
      %p41 = scmp.ge.s32.totalorder %s40, 2
      %s42 = scalar_select %p41, 0, %s40
      %s43 = ssub.s32 %s23, %s42
      %s44 = ssub.s32 %s25, %s34
      %s45 = sor.u32 %s43, %s44
      %p46 = scmp.eq.s32.totalorder %s45, 0
      %s48 = sadd.s32 %s47, 1
      %s49 = scalar_select %p46, %s47, %s48
      %p52 = pneg %p46
      %p53 = scmp.eq.s32.totalorder %s16, 1
      %p54 = por %p52, %p53
      %p55 = scmp.ne.s32.totalorder %s47, %s50
      %p56 = scmp.eq.s32.totalorder %s16, 0
      %p57 = por %p55, %p56
      %p58 = scmp.ne.s32.totalorder %s47, %s50
      %p59 = scmp.eq.s32.totalorder %s21, 1
      %p60 = por %p58, %p59
      %p61 = scmp.ne.s32.totalorder %s50, %s51
      %p62 = scmp.eq.s32.totalorder %s21, 0
      %p63 = por %p61, %p62
      %p64 = scmp.ne.s32.totalorder %s50, %s51
      %p65 = scmp.eq.s32.totalorder %s22, 1
      %p66 = por %p64, %p65
      %p68 = scmp.ne.s32.totalorder %s51, %s67
      %p69 = scmp.eq.s32.totalorder %s22, 0
      %p70 = por %p68, %p69
      %s71 = ssub.s32 %s24, %s38
      %p72 = scmp.eq.s32.totalorder %s71, 0
      %s74 = sadd.s32 %s73, 1
      %s75 = scalar_select %p72, %s73, %s74
      %p78 = pneg %p72
      %p79 = scmp.eq.s32.totalorder %s16, 1
      %p80 = por %p78, %p79
      %p81 = scmp.ne.s32.totalorder %s73, %s76
      %p82 = scmp.eq.s32.totalorder %s16, 0
      %p83 = por %p81, %p82
      %p84 = scmp.ne.s32.totalorder %s73, %s76
      %p85 = scmp.eq.s32.totalorder %s21, 1
      %p86 = por %p84, %p85
      %p87 = scmp.ne.s32.totalorder %s76, %s77
      %p88 = scmp.eq.s32.totalorder %s21, 0
      %p89 = por %p87, %p88
      %p90 = scmp.ne.s32.totalorder %s76, %s77
      %p91 = scmp.eq.s32.totalorder %s22, 1
      %p92 = por %p90, %p91
      %p94 = scmp.ne.s32.totalorder %s77, %s93
      %p95 = scmp.eq.s32.totalorder %s22, 0
      %p96 = por %p94, %p95
      %s97 = ssub.s32 %s24, %s38
      %p98 = scmp.eq.s32.totalorder %s97, 0
      %s100 = sadd.s32 %s99, 1
      %s101 = scalar_select %p98, %s99, %s100
      %p104 = pneg %p98
      %p105 = scmp.eq.s32.totalorder %s16, 1
      %p106 = por %p104, %p105
      %p107 = scmp.ne.s32.totalorder %s99, %s102
      %p108 = scmp.eq.s32.totalorder %s16, 0
      %p109 = por %p107, %p108
      %p110 = scmp.ne.s32.totalorder %s99, %s102
      %p111 = scmp.eq.s32.totalorder %s21, 1
      %p112 = por %p110, %p111
      %p113 = scmp.ne.s32.totalorder %s102, %s103
      %p114 = scmp.eq.s32.totalorder %s21, 0
      %p115 = por %p113, %p114
      %p116 = scmp.ne.s32.totalorder %s102, %s103
      %p117 = scmp.eq.s32.totalorder %s22, 1
      %p118 = por %p116, %p117
      %p120 = scmp.ne.s32.totalorder %s103, %s119
      %p121 = scmp.eq.s32.totalorder %s22, 0
      %p122 = por %p120, %p121
      %s123 = ssub.s32 %s24, %s38
      %p124 = scmp.eq.s32.totalorder %s123, 0
      %s126 = sadd.s32 %s125, 1
      %s127 = scalar_select %p124, %s125, %s126
      %p130 = pneg %p124
      %p131 = scmp.eq.s32.totalorder %s16, 1
      %p132 = por %p130, %p131
      %p133 = scmp.ne.s32.totalorder %s125, %s128
      %p134 = scmp.eq.s32.totalorder %s16, 0
      %p135 = por %p133, %p134
      %p136 = scmp.ne.s32.totalorder %s125, %s128
      %p137 = scmp.eq.s32.totalorder %s21, 1
      %p138 = por %p136, %p137
      %p139 = scmp.ne.s32.totalorder %s128, %s129
      %p140 = scmp.eq.s32.totalorder %s21, 0
      %p141 = por %p139, %p140
      %p142 = scmp.ne.s32.totalorder %s128, %s129
      %p143 = scmp.eq.s32.totalorder %s22, 1
      %p144 = por %p142, %p143
      %p146 = scmp.ne.s32.totalorder %s129, %s145
      %p147 = scmp.eq.s32.totalorder %s22, 0
      %p148 = por %p146, %p147
      %s149 = ssub.s32 %s23, %s42
      %s150 = ssub.s32 %s24, %s38
      %s151 = sor.u32 %s149, %s150
      %s152 = ssub.s32 %s25, %s34
      %s153 = sor.u32 %s151, %s152
      %p154 = scmp.eq.s32.totalorder %s153, 0
      %s156 = sadd.s32 %s155, 1
      %s157 = scalar_select %p154, %s155, %s156
      %p160 = pneg %p154
      %p161 = scmp.eq.s32.totalorder %s16, 1
      %p162 = por %p160, %p161
      %p163 = scmp.ne.s32.totalorder %s155, %s158
      %p164 = scmp.eq.s32.totalorder %s16, 0
      %p165 = por %p163, %p164
      %p166 = scmp.ne.s32.totalorder %s155, %s158
      %p167 = scmp.eq.s32.totalorder %s21, 1
      %p168 = por %p166, %p167
      %p169 = scmp.ne.s32.totalorder %s158, %s159
      %p170 = scmp.eq.s32.totalorder %s21, 0
      %p171 = por %p169, %p170
      %p172 = scmp.ne.s32.totalorder %s158, %s159
      %p173 = scmp.eq.s32.totalorder %s22, 1
      %p174 = por %p172, %p173
      %p176 = scmp.ne.s32.totalorder %s159, %s175
      %p177 = scmp.eq.s32.totalorder %s22, 0
      %p178 = por %p176, %p177
      %p179 = scmp.le.s32.totalorder 1, %s16
      %p180 = scmp.lt.s32.totalorder %s16, 3
      %p181 = pnand %p179, %p180
      %p182 = pneg %p181
      // Predicated region
      $region9: #{tpu_custom_call.1} parent=5 // pred_check
        _
      $region10: #{tpu_custom_call.1} parent=5 // pred_check_branch
        %184 = sbr.rel (%p181) target = $region12
      $region11: #{tpu_custom_call.1} parent=5 // pred_region
        %s185 = ssub.s32 %s16, 1
        // Predicated region
        $region13: #{tpu_custom_call.1} parent=11 // pred_check
          %p186 = pneg %p89
        $region14: #{tpu_custom_call.1} parent=11 // pred_check_branch
          %188 = sbr.rel (%p186) target = $region16
        $region15: #{tpu_custom_call.1} parent=11 // pred_region
          %p189 = scmp.lt.s32.totalorder %s27, 0
          %s190 = scalar_select %p189, %s27, 0
          %s191 = smul.addr %s190, 4
          %s192 = scalar_lea.vmem %s1, %s191
        $region16: #{tpu_custom_call.1} parent=11 // pred_fallthru
          _
        // Predicated region
        $region17: #{tpu_custom_call.1} parent=11 // pred_check
          %p193 = pneg %p115
        $region18: #{tpu_custom_call.1} parent=11 // pred_check_branch
          %195 = sbr.rel (%p193) target = $region20
        $region19: #{tpu_custom_call.1} parent=11 // pred_region
          %p196 = scmp.lt.s32.totalorder %s27, 0
          %s197 = scalar_select %p196, %s27, 0
          %s198 = smul.addr %s197, 8
          %s199 = scalar_lea.vmem %s2, %s198
        $region20: #{tpu_custom_call.1} parent=11 // pred_fallthru
          _
        // Predicated region
        $region21: #{tpu_custom_call.1} parent=11 // pred_check
          %p200 = pneg %p141
        $region22: #{tpu_custom_call.1} parent=11 // pred_check_branch
          %202 = sbr.rel (%p200) target = $region24
        $region23: #{tpu_custom_call.1} parent=11 // pred_region
          %p203 = scmp.lt.s32.totalorder %s27, 0
          %s204 = scalar_select %p203, %s27, 0
          %s205 = smul.addr %s204, 8
          %s206 = scalar_lea.vmem %s3, %s205
        $region24: #{tpu_custom_call.1} parent=11 // pred_fallthru
          _
      $region12: #{tpu_custom_call.1} parent=5 // pred_fallthru
        _
      %p207 = scmp.lt.s32.totalorder %s16, 2
      // Predicated region
      $region25: #{tpu_custom_call.1} parent=5 // pred_check
        %p208 = pneg %p207
      $region26: #{tpu_custom_call.1} parent=5 // pred_check_branch
        %210 = sbr.rel (%p208) target = $region28
      $region27: #{tpu_custom_call.1} parent=5 // pred_region
        // Predicated region
        $region29: #{tpu_custom_call.1} parent=27 // pred_check
          %p211 = pneg %p57
        $region30: #{tpu_custom_call.1} parent=27 // pred_check_branch
          %213 = sbr.rel (%p211) target = $region32
        $region31: #{tpu_custom_call.1} parent=27 // pred_region
          %s214 = sand.u32 %s47, 1
          %s215 = scalar_lea.sflag [#allocation3], %s214
          %s216 = sand.u32 %s47, 1
          %s217 = smul.addr %s216, 48
          %s218 = scalar_lea.vmem [#allocation2], %s217
          %s219 = smul.u32 2, %s25
          %221 = vsyncadd %s215, 0
          %s222 = smul.addr %s23, 12
          %s223 = sadd.s32 %s219, %s222
          %s224 = smul.addr %s223, 4
          %s225 = scalar_lea.hbm %s0, %s224
          %s226 = sshll.u32 %s225, 4
          %s227 = int_to_ptr.hbm [resolvable:$true] %s226
          %s228 = sshll.u32 %s218, 4
          %s229 = int_to_ptr.vmem [resolvable:$true] %s228
          %234 = dma.hbm_to_vmem [thread:$0]  %s227, 768, %s229, %s215, 128, 128, 8
        $region32: #{tpu_custom_call.1} parent=27 // pred_fallthru
          _
      $region28: #{tpu_custom_call.1} parent=5 // pred_fallthru
        _
      %p235 = scmp.le.s32.totalorder 1, %s16
      %p236 = scmp.lt.s32.totalorder %s16, 3
      %p237 = pnand %p235, %p236
      %p238 = pneg %p237
      // Predicated region
      $region33: #{tpu_custom_call.1} parent=5 // pred_check
        _
      $region34: #{tpu_custom_call.1} parent=5 // pred_check_branch
        %240 = sbr.rel (%p237) target = $region36
      $region35: #{tpu_custom_call.1} parent=5 // pred_region
        %s241 = ssub.s32 %s16, 1
        %s242 = sand.u32 %s50, 1
        %s243 = scalar_lea.sflag [#allocation3], %s242
        %s244 = sand.u32 %s50, 1
        %s245 = smul.addr %s244, 48
        %s246 = scalar_lea.vmem [#allocation2], %s245
        // Predicated region
        $region37: #{tpu_custom_call.1} parent=35 // pred_check
          %p247 = pneg %p63
        $region38: #{tpu_custom_call.1} parent=35 // pred_check_branch
          %249 = sbr.rel (%p247) target = $region40
        $region39: #{tpu_custom_call.1} parent=35 // pred_region
          %251 = dma.done %s243, 768
        $region40: #{tpu_custom_call.1} parent=35 // pred_fallthru
          _
        %s252 = sand.u32 %s50, 1
        %s253 = scalar_lea.sflag [#allocation3], %s252
        %s254 = sand.u32 %s50, 1
        %s255 = smul.addr %s254, 48
        %s256 = scalar_lea.vmem [#allocation2], %s255
        %p257 = pneg %p63
        %p258 = pneg %p60
        %p259 = scmp.lt.s32.totalorder %s27, 0
        %s260 = scalar_select %p259, %s27, 0
        %s261 = smul.addr %s260, 4
        %s262 = scalar_lea.vmem %s1, %s261
        %p263 = pneg %p89
        %p264 = pneg %p86
        %p265 = scmp.lt.s32.totalorder %s27, 0
        %s266 = scalar_select %p265, %s27, 0
        %s267 = smul.addr %s266, 8
        %s268 = scalar_lea.vmem %s2, %s267
        %p269 = pneg %p115
        %p270 = pneg %p112
        %p271 = scmp.lt.s32.totalorder %s27, 0
        %s272 = scalar_select %p271, %s27, 0
        %s273 = smul.addr %s272, 8
        %s274 = scalar_lea.vmem %s3, %s273
        %p275 = pneg %p141
        %p276 = pneg %p138
        %p277 = pneg %p171
        %p278 = pneg %p168
        %s279 = sand.u32 %s158, 1
        %s280 = scalar_lea.sflag [#allocation4], %s279
        %s281 = sand.u32 %s158, 1
        %s282 = smul.addr %s281, 8
        %s283 = scalar_lea.vmem [#allocation5], %s282
        %s284 = smul.u32 2, %s28
        %p285 = scmp.lt.s32.totalorder %s27, 0
        %s286 = scalar_select %p285, %s27, 0
        %s287 = smul.addr %s286, 4
        %s288 = scalar_lea.vmem %s1, %s287
        %p289 = scmp.lt.s32.totalorder %s27, 0
        %s290 = scalar_select %p289, %s27, 0
        %s291 = smul.addr %s290, 8
        %s292 = scalar_lea.vmem %s2, %s291
        %p293 = scmp.lt.s32.totalorder %s27, 0
        %s294 = scalar_select %p293, %s27, 0
        %s295 = smul.addr %s294, 8
        %s296 = scalar_lea.vmem %s3, %s295
        %s297 = smul.u32 2, %s28
        %v299 = vld [vmem:[%s288] sm:$0xf]
        %v300 = vld [vmem:[%s246] sm:$0xff]
        %v301 = vld [vmem:[%s246 + $0x8] sm:$0xff]
        %v302 = vld [vmem:[%s246 + $0x10] sm:$0xff]
        %v303 = vld [vmem:[%s246 + $0x18] sm:$0xff]
        %v304 = vld [vmem:[%s246 + $0x20] sm:$0xff]
        %v305 = vld [vmem:[%s246 + $0x28] sm:$0xff]
        %v312 = vunpack.c.l.b16 %v300
        %v313 = vunpack.c.h.b16 %v300
        %v314 = vunpack.c.l.b16 %v301
        %v315 = vunpack.c.h.b16 %v301
        %v316 = vunpack.c.l.b16 %v302
        %v317 = vunpack.c.h.b16 %v302
        %v318 = vunpack.c.l.b16 %v303
        %v319 = vunpack.c.h.b16 %v303
        %v320 = vunpack.c.l.b16 %v304
        %v321 = vunpack.c.h.b16 %v304
        %v322 = vunpack.c.l.b16 %v305
        %v323 = vunpack.c.h.b16 %v305
        %v324 = vpack.c.b16 %v314, %v312
        %v325 = vpack.c.b16 %v315, %v313
        %v326 = vpack.c.b16 %v318, %v316
        %v327 = vpack.c.b16 %v319, %v317
        %v328 = vpack.c.b16 %v322, %v320
        %v329 = vpack.c.b16 %v323, %v321
        %vm336 = vcmask 392192
        %v338 = vsel %vm336, %v299, 0
        %340 = vmatpush.bf16.msra.mxu0 0
        %341 = vmatpush.bf16.msra.mxu0 0
        %342 = vmatpush.bf16.msra.mxu0 0
        %343 = vmatpush.bf16.msra.mxu0 0
        %344 = vmatpush.bf16.msra.mxu0 0
        %345 = vmatpush.bf16.msra.mxu0 %v328
        %346 = vmatpush.bf16.msra.mxu0 %v326
        %347 = vmatpush.bf16.msra.mxu0 %v324
        %348 = vmatmul.bf16.gmra.mxu0 %v338
        %v349 = vpop.f32.mrf.mxu0
        %v350 = vadd.f32 0.0, %v349
        %v351 = vpop.f32.mrf.mxu0
        %352 = vdwg.mxu0
        %353 = vmatpush.bf16.msra.mxu0 0
        %354 = vmatpush.bf16.msra.mxu0 0
        %355 = vmatpush.bf16.msra.mxu0 0
        %356 = vmatpush.bf16.msra.mxu0 0
        %357 = vmatpush.bf16.msra.mxu0 0
        %358 = vmatpush.bf16.msra.mxu0 %v329
        %359 = vmatpush.bf16.msra.mxu0 %v327
        %360 = vmatpush.bf16.msra.mxu0 %v325
        %361 = vmatmul.bf16.gmra.mxu0 %v338
        %v362 = vpop.f32.mrf.mxu0
        %v363 = vadd.f32 0.0, %v362
        %v364 = vpop.f32.mrf.mxu0
        %365 = vdwg.mxu0
        %v366 = vld [vmem:[%s292] sm:$0xff]
        %368 = vset.pattern.permute.xlu0 0
        %369 = vperm.xlu0 %368, %v366
        %v370 = vpop.permute.xlu0 %369
        %v372 = vmul.f32 %v350, %v370
        %v373 = vmul.f32 %v363, %v370
        %v374 = vld [vmem:[%s296] sm:$0xff]
        %376 = vset.pattern.permute.xlu0 0
        %377 = vperm.xlu0 %376, %v374
        %v378 = vpop.permute.xlu0 %377
        %v380 = vadd.f32 %v372, %v378
        %v381 = vadd.f32 %v373, %v378
        %v382 = vxor.u32 %v380, 2147483648
        %v383 = vxor.u32 %v381, 2147483648
        %v384 = vmul.f32 %v382, 1.442695
        %v385 = vpow.pop %v384
        %v386 = vmul.f32 %v383, 1.442695
        %v387 = vpow.pop %v386
        %v388 = vadd.f32 %v385, 1.0
        %v389 = vadd.f32 %v387, 1.0
        %v390 = vrcp.pop %v388
        %v391 = vmul.f32 %v388, %v390
        %v392 = vsub.f32 1.0, %v391
        %v393 = vmul.f32 %v390, %v392
        %v394 = vadd.f32 %v390, %v393
        %vm395 = vweird.f32 %v388
        %vm396 = vweird.f32 %v390
        %vm397 = vmor %vm395, %vm396
        %v398 = vsel %vm397, %v390, %v394
        %v399 = vand.u32 2147483647, %v388
        %vm400 = vcmp.eq.f32.partialorder %v399, 8.507059e+37
        %v401 = vand.u32 %v388, 2147483648
        %v402 = vor.u32 1.1754944e-38, %v401
        %v403 = vsel %vm400, %v402, %v398
        %v404 = vmul.f32 1.0, %v403
        %v405 = vrcp.pop %v389
        %v406 = vmul.f32 %v389, %v405
        %v407 = vsub.f32 1.0, %v406
        %v408 = vmul.f32 %v405, %v407
        %v409 = vadd.f32 %v405, %v408
        %vm410 = vweird.f32 %v389
        %vm411 = vweird.f32 %v405
        %vm412 = vmor %vm410, %vm411
        %v413 = vsel %vm412, %v405, %v409
        %v414 = vand.u32 2147483647, %v389
        %vm415 = vcmp.eq.f32.partialorder %v414, 8.507059e+37
        %v416 = vand.u32 %v389, 2147483648
        %v417 = vor.u32 1.1754944e-38, %v416
        %v418 = vsel %vm415, %v417, %v413
        %v419 = vmul.f32 1.0, %v418
        %v420 = vmul.f32 %v380, %v404
        %v421 = vmul.f32 %v381, %v419
        %v422 = vpack.c.bf16 %v421, %v420
        %423 = vst [vmem:[%s283] sm:$0xff] %v422
        %s424 = sand.u32 %s158, 1
        %s425 = scalar_lea.sflag [#allocation4], %s424
        %s426 = sand.u32 %s158, 1
        %s427 = smul.addr %s426, 8
        %s428 = scalar_lea.vmem [#allocation5], %s427
        // Predicated region
        $region41: #{tpu_custom_call.1} parent=35 // pred_check
          %p429 = pneg %p168
        $region42: #{tpu_custom_call.1} parent=35 // pred_check_branch
          %431 = sbr.rel (%p429) target = $region44
        $region43: #{tpu_custom_call.1} parent=35 // pred_region
          %s432 = smul.u32 2, %s28
          %434 = vsyncadd %s425, 0
          %s435 = smul.addr %s27, 2
          %s436 = sadd.s32 %s432, %s435
          %s437 = smul.addr %s26, 2
          %s438 = sadd.s32 %s436, %s437
          %s439 = smul.addr %s438, 4
          %s440 = scalar_lea.hbm %s4, %s439
          %s442 = sshll.u32 %s428, 4
          %s443 = int_to_ptr.vmem [resolvable:$true] %s442
          %s444 = sshll.u32 %s440, 4
          %s445 = int_to_ptr.hbm [resolvable:$true] %s444
          %447 = dma.vmem_to_hbm [thread:$0]  %s443, 128, %s445, %s425
        $region44: #{tpu_custom_call.1} parent=35 // pred_fallthru
          _
      $region36: #{tpu_custom_call.1} parent=5 // pred_fallthru
        _
      %p448 = scmp.le.s32.totalorder 2, %s16
      // Predicated region
      $region45: #{tpu_custom_call.1} parent=5 // pred_check
        %p449 = pneg %p448
      $region46: #{tpu_custom_call.1} parent=5 // pred_check_branch
        %451 = sbr.rel (%p449) target = $region48
      $region47: #{tpu_custom_call.1} parent=5 // pred_region
        %s452 = ssub.s32 %s16, 2
        // Predicated region
        $region49: #{tpu_custom_call.1} parent=47 // pred_check
          %p453 = pneg %p174
        $region50: #{tpu_custom_call.1} parent=47 // pred_check_branch
          %455 = sbr.rel (%p453) target = $region52
        $region51: #{tpu_custom_call.1} parent=47 // pred_region
          %s456 = sand.u32 %s159, 1
          %s457 = scalar_lea.sflag [#allocation4], %s456
          %s458 = sand.u32 %s159, 1
          %s459 = smul.addr %s458, 8
          %s460 = scalar_lea.vmem [#allocation5], %s459
          %462 = dma.done %s457, 128
        $region52: #{tpu_custom_call.1} parent=47 // pred_fallthru
          _
      $region48: #{tpu_custom_call.1} parent=5 // pred_fallthru
        _
    $region6: #{tpu_custom_call.1} parent=1 // loop_footer
      %s20 = sadd.s32 1, %s16
    $region7: #{tpu_custom_call.1} parent=1 // loop_footer_branch
      %15 = sbr.rel target = $region3
    $region8: #{tpu_custom_call.1} parent=1 // loop_exit
      _
    %463 = vsyncpa [#allocation3], 1
    %s464 = scalar_lea.sflag [#allocation3], 1
    %465 = vsyncpa %s464, 1
    %466 = vsyncpa [#allocation4], 1
    %s467 = scalar_lea.sflag [#allocation4], 1
    %468 = vsyncpa %s467, 1

// kernel: tpu_custom_call.1
$region0: #{tpu_custom_call.1}
  #allocation0 [shape = 'u32[]', space=smem, size = 0x4, offset = 0x4, fixed_abs, tag = 'smem constant byte address 0x4 - core index']
  #allocation1 [shape = 'u32[72,128]{1,0:T(1,128)}', space=vmem, size = 0x9000, scoped, tag = 'internal scratch']
  %s0 = inlined_call_operand.hbm [shape: bf16[2,48,256], index: 0, kind: input, shape index: {}]
  %s1 = inlined_call_operand.vmem [shape: bf16[8,48], index: 1, kind: input, shape index: {}]
  %s2 = inlined_call_operand.vmem [shape: f32[8,1], index: 2, kind: input, shape index: {}]
  %s3 = inlined_call_operand.vmem [shape: f32[8,1], index: 3, kind: input, shape index: {}]
  %s4 = inlined_call_operand.hbm [shape: bf16[2,8,256], index: 4, kind: output, shape index: {}]
  %s5 = sld [smem:[#allocation0]]
  $region53: #{tpu_custom_call.1} parent=0
    _
  %s7 = ssub.s32 1, %s5
  %s8 = scalar_select 0, %s7, %s5
  $region1: #{tpu_custom_call.1} parent=0
    #allocation2 [shape = 'u8[49152]{0}', space=vmem, size = 0xc000, scoped, tag = 'input window, operand 0']
    #allocation3 [shape = 's32[2]{0}', space=sflag, size = 0x8, scoped, tag = 'scoped memory for tpu_custom_call.1']
    #allocation4 [shape = 's32[2]{0}', space=sflag, size = 0x8, scoped, tag = 'scoped memory for tpu_custom_call.1']
    #allocation5 [shape = 'u8[8192]{0}', space=vmem, size = 0x2000, scoped, tag = 'output window, operand 0']
    %9 = vsyncpa [#allocation3], 0
    %s10 = scalar_lea.sflag [#allocation3], 1
    %11 = vsyncpa %s10, 0
    %12 = vsyncpa [#allocation4], 0
    %s13 = scalar_lea.sflag [#allocation4], 1
    %14 = vsyncpa %s13, 0
    loop: start=0, step=1, limit=4
    $region2: #{tpu_custom_call.1} parent=1 // loop_pre_header
      _
    $region3: #{tpu_custom_call.1} parent=1 // loop_header
      %s16 = sphi 0, %s20
      %p17 = scmp.ge.s32.totalorder %s16, 4
      %s23 = sphi 0, %s42
      %s24 = sphi 0, %s38
      %s25 = sphi 0, %s34
      %s26 = sphi 0, %s23
      %s27 = sphi 0, %s24
      %s28 = sphi 0, %s25
      %s29 = sphi 0, %s26
      %s30 = sphi 0, %s27
      %s31 = sphi 0, %s28
      %s47 = sphi 0, %s49
      %s50 = sphi 0, %s47
      %s51 = sphi 0, %s50
      %s67 = sphi 0, %s51
      %s73 = sphi 0, %s75
      %s76 = sphi 0, %s73
      %s77 = sphi 0, %s76
      %s93 = sphi 0, %s77
      %s99 = sphi 0, %s101
      %s102 = sphi 0, %s99
      %s103 = sphi 0, %s102
      %s119 = sphi 0, %s103
      %s125 = sphi 0, %s127
      %s128 = sphi 0, %s125
      %s129 = sphi 0, %s128
      %s145 = sphi 0, %s129
      %s155 = sphi 0, %s157
      %s158 = sphi 0, %s155
      %s159 = sphi 0, %s158
      %s175 = sphi 0, %s159
    $region4: #{tpu_custom_call.1} parent=1 // loop_header_branch
      %19 = sbr.rel (%p17) target = $region8
    $region5: #{tpu_custom_call.1} parent=1 // loop_body
      %s21 = ssub.s32 %s16, 1
      %s22 = ssub.s32 %s16, 2
      %s32 = sadd.s32 1, %s25
      %p33 = scmp.ge.s32.totalorder %s32, 1
      %s34 = scalar_select %p33, 0, %s32
      %s35 = sadd.s32 1, %s24
      %s36 = scalar_select %p33, %s35, %s24
      %p37 = scmp.ge.s32.totalorder %s36, 1
      %s38 = scalar_select %p37, 0, %s36
      %s39 = sadd.s32 1, %s23
      %s40 = scalar_select %p37, %s39, %s23
      %p41 = scmp.ge.s32.totalorder %s40, 2
      %s42 = scalar_select %p41, 0, %s40
      %s43 = ssub.s32 %s23, %s42
      %s44 = ssub.s32 %s25, %s34
      %s45 = sor.u32 %s43, %s44
      %p46 = scmp.eq.s32.totalorder %s45, 0
      %s48 = sadd.s32 %s47, 1
      %s49 = scalar_select %p46, %s47, %s48
      %p52 = pneg %p46
      %p53 = scmp.eq.s32.totalorder %s16, 1
      %p54 = por %p52, %p53
      %p55 = scmp.ne.s32.totalorder %s47, %s50
      %p56 = scmp.eq.s32.totalorder %s16, 0
      %p57 = por %p55, %p56
      %p58 = scmp.ne.s32.totalorder %s47, %s50
      %p59 = scmp.eq.s32.totalorder %s21, 1
      %p60 = por %p58, %p59
      %p61 = scmp.ne.s32.totalorder %s50, %s51
      %p62 = scmp.eq.s32.totalorder %s21, 0
      %p63 = por %p61, %p62
      %p64 = scmp.ne.s32.totalorder %s50, %s51
      %p65 = scmp.eq.s32.totalorder %s22, 1
      %p66 = por %p64, %p65
      %p68 = scmp.ne.s32.totalorder %s51, %s67
      %p69 = scmp.eq.s32.totalorder %s22, 0
      %p70 = por %p68, %p69
      %s71 = ssub.s32 %s24, %s38
      %p72 = scmp.eq.s32.totalorder %s71, 0
      %s74 = sadd.s32 %s73, 1
      %s75 = scalar_select %p72, %s73, %s74
      %p78 = pneg %p72
      %p79 = scmp.eq.s32.totalorder %s16, 1
      %p80 = por %p78, %p79
      %p81 = scmp.ne.s32.totalorder %s73, %s76
      %p82 = scmp.eq.s32.totalorder %s16, 0
      %p83 = por %p81, %p82
      %p84 = scmp.ne.s32.totalorder %s73, %s76
      %p85 = scmp.eq.s32.totalorder %s21, 1
      %p86 = por %p84, %p85
      %p87 = scmp.ne.s32.totalorder %s76, %s77
      %p88 = scmp.eq.s32.totalorder %s21, 0
      %p89 = por %p87, %p88
      %p90 = scmp.ne.s32.totalorder %s76, %s77
      %p91 = scmp.eq.s32.totalorder %s22, 1
      %p92 = por %p90, %p91
      %p94 = scmp.ne.s32.totalorder %s77, %s93
      %p95 = scmp.eq.s32.totalorder %s22, 0
      %p96 = por %p94, %p95
      %s97 = ssub.s32 %s24, %s38
      %p98 = scmp.eq.s32.totalorder %s97, 0
      %s100 = sadd.s32 %s99, 1
      %s101 = scalar_select %p98, %s99, %s100
      %p104 = pneg %p98
      %p105 = scmp.eq.s32.totalorder %s16, 1
      %p106 = por %p104, %p105
      %p107 = scmp.ne.s32.totalorder %s99, %s102
      %p108 = scmp.eq.s32.totalorder %s16, 0
      %p109 = por %p107, %p108
      %p110 = scmp.ne.s32.totalorder %s99, %s102
      %p111 = scmp.eq.s32.totalorder %s21, 1
      %p112 = por %p110, %p111
      %p113 = scmp.ne.s32.totalorder %s102, %s103
      %p114 = scmp.eq.s32.totalorder %s21, 0
      %p115 = por %p113, %p114
      %p116 = scmp.ne.s32.totalorder %s102, %s103
      %p117 = scmp.eq.s32.totalorder %s22, 1
      %p118 = por %p116, %p117
      %p120 = scmp.ne.s32.totalorder %s103, %s119
      %p121 = scmp.eq.s32.totalorder %s22, 0
      %p122 = por %p120, %p121
      %s123 = ssub.s32 %s24, %s38
      %p124 = scmp.eq.s32.totalorder %s123, 0
      %s126 = sadd.s32 %s125, 1
      %s127 = scalar_select %p124, %s125, %s126
      %p130 = pneg %p124
      %p131 = scmp.eq.s32.totalorder %s16, 1
      %p132 = por %p130, %p131
      %p133 = scmp.ne.s32.totalorder %s125, %s128
      %p134 = scmp.eq.s32.totalorder %s16, 0
      %p135 = por %p133, %p134
      %p136 = scmp.ne.s32.totalorder %s125, %s128
      %p137 = scmp.eq.s32.totalorder %s21, 1
      %p138 = por %p136, %p137
      %p139 = scmp.ne.s32.totalorder %s128, %s129
      %p140 = scmp.eq.s32.totalorder %s21, 0
      %p141 = por %p139, %p140
      %p142 = scmp.ne.s32.totalorder %s128, %s129
      %p143 = scmp.eq.s32.totalorder %s22, 1
      %p144 = por %p142, %p143
      %p146 = scmp.ne.s32.totalorder %s129, %s145
      %p147 = scmp.eq.s32.totalorder %s22, 0
      %p148 = por %p146, %p147
      %s149 = ssub.s32 %s23, %s42
      %s150 = ssub.s32 %s24, %s38
      %s151 = sor.u32 %s149, %s150
      %s152 = ssub.s32 %s25, %s34
      %s153 = sor.u32 %s151, %s152
      %p154 = scmp.eq.s32.totalorder %s153, 0
      %s156 = sadd.s32 %s155, 1
      %s157 = scalar_select %p154, %s155, %s156
      %p160 = pneg %p154
      %p161 = scmp.eq.s32.totalorder %s16, 1
      %p162 = por %p160, %p161
      %p163 = scmp.ne.s32.totalorder %s155, %s158
      %p164 = scmp.eq.s32.totalorder %s16, 0
      %p165 = por %p163, %p164
      %p166 = scmp.ne.s32.totalorder %s155, %s158
      %p167 = scmp.eq.s32.totalorder %s21, 1
      %p168 = por %p166, %p167
      %p169 = scmp.ne.s32.totalorder %s158, %s159
      %p170 = scmp.eq.s32.totalorder %s21, 0
      %p171 = por %p169, %p170
      %p172 = scmp.ne.s32.totalorder %s158, %s159
      %p173 = scmp.eq.s32.totalorder %s22, 1
      %p174 = por %p172, %p173
      %p176 = scmp.ne.s32.totalorder %s159, %s175
      %p177 = scmp.eq.s32.totalorder %s22, 0
      %p178 = por %p176, %p177
      %p179 = scmp.le.s32.totalorder 1, %s16
      %p180 = scmp.lt.s32.totalorder %s16, 3
      %p181 = pnand %p179, %p180
      %p182 = pneg %p181
      // Predicated region
      $region9: #{tpu_custom_call.1} parent=5 // pred_check
        _
      $region10: #{tpu_custom_call.1} parent=5 // pred_check_branch
        %184 = sbr.rel (%p181) target = $region12
      $region11: #{tpu_custom_call.1} parent=5 // pred_region
        %s185 = ssub.s32 %s16, 1
        // Predicated region
        $region13: #{tpu_custom_call.1} parent=11 // pred_check
          %p186 = pneg %p89
        $region14: #{tpu_custom_call.1} parent=11 // pred_check_branch
          %188 = sbr.rel (%p186) target = $region16
        $region15: #{tpu_custom_call.1} parent=11 // pred_region
          %p189 = scmp.lt.s32.totalorder %s27, 0
          %s190 = scalar_select %p189, %s27, 0
          %s191 = smul.addr %s190, 4
          %s192 = scalar_lea.vmem %s1, %s191
        $region16: #{tpu_custom_call.1} parent=11 // pred_fallthru
          _
        // Predicated region
        $region17: #{tpu_custom_call.1} parent=11 // pred_check
          %p193 = pneg %p115
        $region18: #{tpu_custom_call.1} parent=11 // pred_check_branch
          %195 = sbr.rel (%p193) target = $region20
        $region19: #{tpu_custom_call.1} parent=11 // pred_region
          %p196 = scmp.lt.s32.totalorder %s27, 0
          %s197 = scalar_select %p196, %s27, 0
          %s198 = smul.addr %s197, 8
          %s199 = scalar_lea.vmem %s2, %s198
        $region20: #{tpu_custom_call.1} parent=11 // pred_fallthru
          _
        // Predicated region
        $region21: #{tpu_custom_call.1} parent=11 // pred_check
          %p200 = pneg %p141
        $region22: #{tpu_custom_call.1} parent=11 // pred_check_branch
          %202 = sbr.rel (%p200) target = $region24
        $region23: #{tpu_custom_call.1} parent=11 // pred_region
          %p203 = scmp.lt.s32.totalorder %s27, 0
          %s204 = scalar_select %p203, %s27, 0
          %s205 = smul.addr %s204, 8
          %s206 = scalar_lea.vmem %s3, %s205
        $region24: #{tpu_custom_call.1} parent=11 // pred_fallthru
          _
      $region12: #{tpu_custom_call.1} parent=5 // pred_fallthru
        _
      %p207 = scmp.lt.s32.totalorder %s16, 2
      // Predicated region
      $region25: #{tpu_custom_call.1} parent=5 // pred_check
        %p208 = pneg %p207
      $region26: #{tpu_custom_call.1} parent=5 // pred_check_branch
        %210 = sbr.rel (%p208) target = $region28
      $region27: #{tpu_custom_call.1} parent=5 // pred_region
        // Predicated region
        $region29: #{tpu_custom_call.1} parent=27 // pred_check
          %p211 = pneg %p57
        $region30: #{tpu_custom_call.1} parent=27 // pred_check_branch
          %213 = sbr.rel (%p211) target = $region32
        $region31: #{tpu_custom_call.1} parent=27 // pred_region
          %s214 = sand.u32 %s47, 1
          %s215 = scalar_lea.sflag [#allocation3], %s214
          %s216 = sand.u32 %s47, 1
          %s217 = smul.addr %s216, 48
          %s218 = scalar_lea.vmem [#allocation2], %s217
          %s219 = smul.u32 2, %s25
          %221 = vsyncadd %s215, 0
          %s222 = smul.addr %s23, 12
          %s223 = sadd.s32 %s219, %s222
          %s224 = smul.addr %s223, 4
          %s225 = scalar_lea.hbm %s0, %s224
          %s226 = sshll.u32 %s225, 4
          %s227 = int_to_ptr.hbm [resolvable:$true] %s226
          %s228 = sshll.u32 %s218, 4
          %s229 = int_to_ptr.vmem [resolvable:$true] %s228
          %234 = dma.hbm_to_vmem [thread:$0]  %s227, 768, %s229, %s215, 128, 128, 8
        $region32: #{tpu_custom_call.1} parent=27 // pred_fallthru
          _
      $region28: #{tpu_custom_call.1} parent=5 // pred_fallthru
        _
      %p235 = scmp.le.s32.totalorder 1, %s16
      %p236 = scmp.lt.s32.totalorder %s16, 3
      %p237 = pnand %p235, %p236
      %p238 = pneg %p237
      // Predicated region
      $region33: #{tpu_custom_call.1} parent=5 // pred_check
        _
      $region34: #{tpu_custom_call.1} parent=5 // pred_check_branch
        %240 = sbr.rel (%p237) target = $region36
      $region35: #{tpu_custom_call.1} parent=5 // pred_region
        %s241 = ssub.s32 %s16, 1
        %s242 = sand.u32 %s50, 1
        %s243 = scalar_lea.sflag [#allocation3], %s242
        %s244 = sand.u32 %s50, 1
        %s245 = smul.addr %s244, 48
        %s246 = scalar_lea.vmem [#allocation2], %s245
        // Predicated region
        $region37: #{tpu_custom_call.1} parent=35 // pred_check
          %p247 = pneg %p63
        $region38: #{tpu_custom_call.1} parent=35 // pred_check_branch
          %249 = sbr.rel (%p247) target = $region40
        $region39: #{tpu_custom_call.1} parent=35 // pred_region
          %251 = dma.done %s243, 768
        $region40: #{tpu_custom_call.1} parent=35 // pred_fallthru
          _
        %s252 = sand.u32 %s50, 1
        %s253 = scalar_lea.sflag [#allocation3], %s252
        %s254 = sand.u32 %s50, 1
        %s255 = smul.addr %s254, 48
        %s256 = scalar_lea.vmem [#allocation2], %s255
        %p257 = pneg %p63
        %p258 = pneg %p60
        %p259 = scmp.lt.s32.totalorder %s27, 0
        %s260 = scalar_select %p259, %s27, 0
        %s261 = smul.addr %s260, 4
        %s262 = scalar_lea.vmem %s1, %s261
        %p263 = pneg %p89
        %p264 = pneg %p86
        %p265 = scmp.lt.s32.totalorder %s27, 0
        %s266 = scalar_select %p265, %s27, 0
        %s267 = smul.addr %s266, 8
        %s268 = scalar_lea.vmem %s2, %s267
        %p269 = pneg %p115
        %p270 = pneg %p112
        %p271 = scmp.lt.s32.totalorder %s27, 0
        %s272 = scalar_select %p271, %s27, 0
        %s273 = smul.addr %s272, 8
        %s274 = scalar_lea.vmem %s3, %s273
        %p275 = pneg %p141
        %p276 = pneg %p138
        %p277 = pneg %p171
        %p278 = pneg %p168
        %s279 = sand.u32 %s158, 1
        %s280 = scalar_lea.sflag [#allocation4], %s279
        %s281 = sand.u32 %s158, 1
        %s282 = smul.addr %s281, 8
        %s283 = scalar_lea.vmem [#allocation5], %s282
        %s284 = smul.u32 2, %s28
        %p285 = scmp.lt.s32.totalorder %s27, 0
        %s286 = scalar_select %p285, %s27, 0
        %s287 = smul.addr %s286, 4
        %s288 = scalar_lea.vmem %s1, %s287
        %p289 = scmp.lt.s32.totalorder %s27, 0
        %s290 = scalar_select %p289, %s27, 0
        %s291 = smul.addr %s290, 8
        %s292 = scalar_lea.vmem %s2, %s291
        %p293 = scmp.lt.s32.totalorder %s27, 0
        %s294 = scalar_select %p293, %s27, 0
        %s295 = smul.addr %s294, 8
        %s296 = scalar_lea.vmem %s3, %s295
        %s297 = smul.u32 2, %s28
        %v299 = vld [vmem:[%s288] sm:$0xf]
        %v300 = vld [vmem:[%s246] sm:$0xff]
        %v301 = vld [vmem:[%s246 + $0x8] sm:$0xff]
        %v302 = vld [vmem:[%s246 + $0x10] sm:$0xff]
        %v303 = vld [vmem:[%s246 + $0x18] sm:$0xff]
        %v304 = vld [vmem:[%s246 + $0x20] sm:$0xff]
        %v305 = vld [vmem:[%s246 + $0x28] sm:$0xff]
        %v312 = vunpack.c.l.b16 %v300
        %v313 = vunpack.c.h.b16 %v300
        %v314 = vunpack.c.l.b16 %v301
        %v315 = vunpack.c.h.b16 %v301
        %v316 = vunpack.c.l.b16 %v302
        %v317 = vunpack.c.h.b16 %v302
        %v318 = vunpack.c.l.b16 %v303
        %v319 = vunpack.c.h.b16 %v303
        %v320 = vunpack.c.l.b16 %v304
        %v321 = vunpack.c.h.b16 %v304
        %v322 = vunpack.c.l.b16 %v305
        %v323 = vunpack.c.h.b16 %v305
        %v324 = vpack.c.b16 %v314, %v312
        %v325 = vpack.c.b16 %v315, %v313
        %v326 = vpack.c.b16 %v318, %v316
        %v327 = vpack.c.b16 %v319, %v317
        %v328 = vpack.c.b16 %v322, %v320
        %v329 = vpack.c.b16 %v323, %v321
        %vm336 = vcmask 392192
        %v338 = vsel %vm336, %v299, 0
        %340 = vmatpush.bf16.msra.mxu0 0
        %341 = vmatpush.bf16.msra.mxu0 0
        %342 = vmatpush.bf16.msra.mxu0 0
        %343 = vmatpush.bf16.msra.mxu0 0
        %344 = vmatpush.bf16.msra.mxu0 0
        %345 = vmatpush.bf16.msra.mxu0 %v328
        %346 = vmatpush.bf16.msra.mxu0 %v326
        %347 = vmatpush.bf16.msra.mxu0 %v324
        %348 = vmatmul.bf16.gmra.mxu0 %v338
        %v349 = vpop.f32.mrf.mxu0
        %v350 = vadd.f32 0.0, %v349
        %v351 = vpop.f32.mrf.mxu0
        %352 = vdwg.mxu0
        %353 = vmatpush.bf16.msra.mxu0 0
        %354 = vmatpush.bf16.msra.mxu0 0
        %355 = vmatpush.bf16.msra.mxu0 0
        %356 = vmatpush.bf16.msra.mxu0 0
        %357 = vmatpush.bf16.msra.mxu0 0
        %358 = vmatpush.bf16.msra.mxu0 %v329
        %359 = vmatpush.bf16.msra.mxu0 %v327
        %360 = vmatpush.bf16.msra.mxu0 %v325
        %361 = vmatmul.bf16.gmra.mxu0 %v338
        %v362 = vpop.f32.mrf.mxu0
        %v363 = vadd.f32 0.0, %v362
        %v364 = vpop.f32.mrf.mxu0
        %365 = vdwg.mxu0
        %v366 = vld [vmem:[%s292] sm:$0xff]
        %368 = vset.pattern.permute.xlu0 0
        %369 = vperm.xlu0 %368, %v366
        %v370 = vpop.permute.xlu0 %369
        %v372 = vmul.f32 %v350, %v370
        %v373 = vmul.f32 %v363, %v370
        %v374 = vld [vmem:[%s296] sm:$0xff]
        %376 = vset.pattern.permute.xlu0 0
        %377 = vperm.xlu0 %376, %v374
        %v378 = vpop.permute.xlu0 %377
        %v380 = vadd.f32 %v372, %v378
        %v381 = vadd.f32 %v373, %v378
        %v382 = vxor.u32 %v380, 2147483648
        %v383 = vxor.u32 %v381, 2147483648
        %v384 = vmul.f32 %v382, 1.442695
        %v385 = vpow.pop %v384
        %v386 = vmul.f32 %v383, 1.442695
        %v387 = vpow.pop %v386
        %v388 = vadd.f32 %v385, 1.0
        %v389 = vadd.f32 %v387, 1.0
        %v390 = vrcp.pop %v388
        %v391 = vmul.f32 %v388, %v390
        %v392 = vsub.f32 1.0, %v391
        %v393 = vmul.f32 %v390, %v392
        %v394 = vadd.f32 %v390, %v393
        %vm395 = vweird.f32 %v388
        %vm396 = vweird.f32 %v390
        %vm397 = vmor %vm395, %vm396
        %v398 = vsel %vm397, %v390, %v394
        %v399 = vand.u32 2147483647, %v388
        %vm400 = vcmp.eq.f32.partialorder %v399, 8.507059e+37
        %v401 = vand.u32 %v388, 2147483648
        %v402 = vor.u32 1.1754944e-38, %v401
        %v403 = vsel %vm400, %v402, %v398
        %v404 = vmul.f32 1.0, %v403
        %v405 = vrcp.pop %v389
        %v406 = vmul.f32 %v389, %v405
        %v407 = vsub.f32 1.0, %v406
        %v408 = vmul.f32 %v405, %v407
        %v409 = vadd.f32 %v405, %v408
        %vm410 = vweird.f32 %v389
        %vm411 = vweird.f32 %v405
        %vm412 = vmor %vm410, %vm411
        %v413 = vsel %vm412, %v405, %v409
        %v414 = vand.u32 2147483647, %v389
        %vm415 = vcmp.eq.f32.partialorder %v414, 8.507059e+37
        %v416 = vand.u32 %v389, 2147483648
        %v417 = vor.u32 1.1754944e-38, %v416
        %v418 = vsel %vm415, %v417, %v413
        %v419 = vmul.f32 1.0, %v418
        %v420 = vmul.f32 %v380, %v404
        %v421 = vmul.f32 %v381, %v419
        %v422 = vpack.c.bf16 %v421, %v420
        %423 = vst [vmem:[%s283] sm:$0xff] %v422
        %s424 = sand.u32 %s158, 1
        %s425 = scalar_lea.sflag [#allocation4], %s424
        %s426 = sand.u32 %s158, 1
        %s427 = smul.addr %s426, 8
        %s428 = scalar_lea.vmem [#allocation5], %s427
        // Predicated region
        $region41: #{tpu_custom_call.1} parent=35 // pred_check
          %p429 = pneg %p168
        $region42: #{tpu_custom_call.1} parent=35 // pred_check_branch
          %431 = sbr.rel (%p429) target = $region44
        $region43: #{tpu_custom_call.1} parent=35 // pred_region
          %s432 = smul.u32 2, %s28
          %434 = vsyncadd %s425, 0
          %s435 = smul.addr %s27, 2
          %s436 = sadd.s32 %s432, %s435
          %s437 = smul.addr %s26, 2
          %s438 = sadd.s32 %s436, %s437
          %s439 = smul.addr %s438, 4
          %s440 = scalar_lea.hbm %s4, %s439
          %s442 = sshll.u32 %s428, 4
          %s443 = int_to_ptr.vmem [resolvable:$true] %s442
          %s444 = sshll.u32 %s440, 4
          %s445 = int_to_ptr.hbm [resolvable:$true] %s444
          %447 = dma.vmem_to_hbm [thread:$0]  %s443, 128, %s445, %s425
        $region44: #{tpu_custom_call.1} parent=35 // pred_fallthru
          _
      $region36: #{tpu_custom_call.1} parent=5 // pred_fallthru
        _
      %p448 = scmp.le.s32.totalorder 2, %s16
      // Predicated region
      $region45: #{tpu_custom_call.1} parent=5 // pred_check
        %p449 = pneg %p448
      $region46: #{tpu_custom_call.1} parent=5 // pred_check_branch
        %451 = sbr.rel (%p449) target = $region48
      $region47: #{tpu_custom_call.1} parent=5 // pred_region
        %s452 = ssub.s32 %s16, 2
        // Predicated region
        $region49: #{tpu_custom_call.1} parent=47 // pred_check
          %p453 = pneg %p174
        $region50: #{tpu_custom_call.1} parent=47 // pred_check_branch
          %455 = sbr.rel (%p453) target = $region52
        $region51: #{tpu_custom_call.1} parent=47 // pred_region
          %s456 = sand.u32 %s159, 1
          %s457 = scalar_lea.sflag [#allocation4], %s456
          %s458 = sand.u32 %s159, 1
          %s459 = smul.addr %s458, 8
          %s460 = scalar_lea.vmem [#allocation5], %s459
          %462 = dma.done %s457, 128
        $region52: #{tpu_custom_call.1} parent=47 // pred_fallthru
          _
      $region48: #{tpu_custom_call.1} parent=5 // pred_fallthru
        _
    $region6: #{tpu_custom_call.1} parent=1 // loop_footer
      %s20 = sadd.s32 1, %s16
    $region7: #{tpu_custom_call.1} parent=1 // loop_footer_branch
      %15 = sbr.rel target = $region3
    $region8: #{tpu_custom_call.1} parent=1 // loop_exit
      _
    %463 = vsyncpa [#allocation3], 1
    %s464 = scalar_lea.sflag [#allocation3], 1
    %465 = vsyncpa %s464, 1
    %466 = vsyncpa [#allocation4], 1
    %s467 = scalar_lea.sflag [#allocation4], 1
    %468 = vsyncpa %s467, 1

</llo_original>
